<compile_context>
chip_gen: v6e
topology: v6e:2x2x1
jax: 0.10.0
libtpu: 0.0.40
codegen_flags: <defaults>
</compile_context>

<pallas_src>
import functools

import jax
import jax.numpy as jnp
from jax.experimental import pallas as pl
from jax.experimental.pallas import tpu as pltpu


def _center_loss_kernel(x_ref, c_ref, lab_ref, out_ref, *, num_classes,
                        use_onehot_mxu):
    # x_ref:   (tm, D) f32  -- streamed batch tile
    # c_ref:   (C, D)  f32  -- full centers, VMEM-resident (constant block)
    # lab_ref: (tm, 1) i32
    # out_ref: (1, 1, 1) f32 -- per-tile partial sum
    x = x_ref[...]                                    # (tm, D)
    labels = lab_ref[...]                             # (tm, 1)

    if use_onehot_mxu:
        # Moderate C: exact gather-as-matmul on the MXU (one-hot is exact 0/1
        # in f32, so c_y[i] == centers[labels[i]] bit-exactly).
        # TODO(synk): for C in the thousands, replace with a scalar-prefetch /
        # DMA-driven row gather so the kernel stays HBM-bound instead of
        # spending O(tm*C*D) f32 MXU flops.
        c = c_ref[...]                                # (C, D)
        tm = x.shape[0]
        class_ids = jax.lax.broadcasted_iota(jnp.int32, (tm, num_classes), 1)
        onehot = (class_ids == labels).astype(jnp.float32)
        c_y = jax.lax.dot_general(
            onehot, c,
            dimension_numbers=(((1,), (0,)), ((), ())),
            preferred_element_type=jnp.float32)       # (tm, D)
    else:
        # Small C (module default is 2): pure-VPU select, MXU not involved.
        c_y = jnp.zeros_like(x)
        for j in range(num_classes):                  # static unroll, C <= 16
            c_y = jnp.where(labels == j, c_ref[j:j + 1, :], c_y)

    diff = x - c_y
    row_d = jnp.sum(diff * diff, axis=1, keepdims=True)        # (tm, 1)
    # Matches torch clamp on the matched (label) entries of distmat.
    row_d = jnp.clip(row_d, 1e-12, 1e12)
    # Padded rows (label == -1) contribute nothing; the masked-out distmat
    # entries of valid rows are added analytically outside the kernel.
    row_d = jnp.where(labels >= 0, row_d, 0.0)
    out_ref[...] = jnp.sum(row_d, axis=0, keepdims=True).reshape(1, 1, 1)


def center_loss(x, centers, labels, *, block_batch=512):
    """x: (B, D) f32, centers: (C, D) f32, labels: (B,) int -> scalar f32."""
    B, D = x.shape
    C = centers.shape[0]

    x = x.astype(jnp.float32)
    centers = centers.astype(jnp.float32)
    labels = labels.astype(jnp.int32)

    d_pad = ((D + 127) // 128) * 128
    # Batch tile: up to block_batch rows (multiple of 8 sublanes), capped so
    # the double-buffered x stream stays within ~12 MiB of VMEM.
    tm_cap = max(8, (((12 << 20) // (2 * 4 * d_pad)) // 8) * 8)
    tm = min(block_batch, tm_cap)
    if B <= tm:
        tm = max(8, ((B + 7) // 8) * 8)
    b_pad = pl.cdiv(B, tm) * tm
    n_pad = b_pad - B
    if n_pad:
        # Padded rows: x = 0, label = -1 -> masked out inside the kernel.
        x = jnp.pad(x, ((0, n_pad), (0, 0)))
        labels = jnp.pad(labels, ((0, n_pad),), constant_values=-1)
    labels2d = labels.reshape(b_pad, 1)
    nt = b_pad // tm

    use_onehot_mxu = C > 16

    # Explicit VMEM budget: double-buffered x stream + resident centers
    # (allocation is still double-buffered) + lane-padded label blocks + slack.
    c_pad = max(((C + 7) // 8) * 8, 8)
    vmem_need = 4 * (2 * tm * d_pad + 2 * c_pad * d_pad + 2 * tm * 128)
    vmem_limit = int(min(max(vmem_need + (4 << 20), 16 << 20), 64 << 20))

    kernel = functools.partial(_center_loss_kernel, num_classes=C,
                               use_onehot_mxu=use_onehot_mxu)

    partials = pl.pallas_call(
        kernel,
        out_shape=jax.ShapeDtypeStruct((nt, 1, 1), jnp.float32),
        grid_spec=pltpu.PrefetchScalarGridSpec(
            num_scalar_prefetch=0,
            grid=(nt,),
            in_specs=[
                pl.BlockSpec((tm, D), lambda i: (i, 0)),   # x: streamed tiles
                pl.BlockSpec((C, D), lambda i: (0, 0)),    # centers: resident
                pl.BlockSpec((tm, 1), lambda i: (i, 0)),   # labels per tile
            ],
            out_specs=pl.BlockSpec((1, 1, 1), lambda i: (i, 0, 0)),
        ),
        compiler_params=pltpu.CompilerParams(
            dimension_semantics=("parallel",),
            vmem_limit_bytes=vmem_limit,
        ),
    )(x, centers, labels2d)

    # Every masked-out (i, j != labels[i]) entry of distmat is clamp(0) = 1e-12.
    masked_extra = jnp.float32(B * (C - 1) * 1e-12)
    return (jnp.sum(partials) + masked_extra) / jnp.float32(B)


def xavier_uniform(key, shape, dtype=jnp.float32):
    # Matches torch.nn.init.xavier_uniform_ for a 2D (fan_out, fan_in) tensor.
    fan_out, fan_in = shape
    bound = (6.0 / (fan_in + fan_out)) ** 0.5
    return jax.random.uniform(key, shape, dtype, minval=-bound, maxval=bound)


def _ref_center_loss(x, centers, labels):
    # Pure-JAX reference, identical math to the PyTorch module.
    B = x.shape[0]
    C = centers.shape[0]
    distmat = (jnp.sum(x ** 2, axis=1, keepdims=True)
               + jnp.sum(centers ** 2, axis=1, keepdims=True).T
               - 2.0 * (x @ centers.T))
    mask = (labels[:, None] == jnp.arange(C)[None, :]).astype(jnp.float32)
    return jnp.sum(jnp.clip(distmat * mask, 1e-12, 1e12)) / B


if __name__ == "__main__":
    num_classes = 2
    feat_dim = 512
    batch = 8

    key = jax.random.PRNGKey(0)
    k_centers, k_x, k_labels = jax.random.split(key, 3)

    centers = xavier_uniform(k_centers, (num_classes, feat_dim))
    x = jax.random.normal(k_x, (batch, feat_dim), dtype=jnp.float32)
    labels = jax.random.randint(k_labels, (batch,), 0, num_classes,
                                dtype=jnp.int32)

    loss = center_loss(x, centers, labels)
    jax.block_until_ready(loss)
    ref = _ref_center_loss(x, centers, labels)
    assert jnp.allclose(loss, ref, rtol=5e-4, atol=1e-3), (loss, ref)

    # Batch-padding path (batch not a multiple of 8).
    x2 = jax.random.normal(jax.random.PRNGKey(1), (5, feat_dim),
                           dtype=jnp.float32)
    labels2 = jax.random.randint(jax.random.PRNGKey(2), (5,), 0, num_classes,
                                 dtype=jnp.int32)
    loss2 = center_loss(x2, centers, labels2)
    jax.block_until_ready(loss2)
    ref2 = _ref_center_loss(x2, centers, labels2)
    assert jnp.allclose(loss2, ref2, rtol=5e-4, atol=1e-3), (loss2, ref2)

    # Multi-tile ("parallel" per-tile partials) + moderate-C one-hot MXU path.
    C3, D3, B3 = 32, 128, 24
    centers3 = xavier_uniform(jax.random.PRNGKey(3), (C3, D3))
    x3 = jax.random.normal(jax.random.PRNGKey(4), (B3, D3), dtype=jnp.float32)
    labels3 = jax.random.randint(jax.random.PRNGKey(5), (B3,), 0, C3,
                                 dtype=jnp.int32)
    loss3 = center_loss(x3, centers3, labels3, block_batch=8)
    jax.block_until_ready(loss3)
    ref3 = _ref_center_loss(x3, centers3, labels3)
    assert jnp.allclose(loss3, ref3, rtol=5e-4, atol=1e-3), (loss3, ref3)

    # TODO(synk): get_assignment / target_distribution are not part of forward()
    # and are not implemented as kernels.
    print("KERNEL_OK")
</pallas_src>

<mosaic_0001>
module attributes {stable_mosaic.version = 11 : i64} {
  func.func @_center_loss_kernel(%arg0: i32, %arg1: memref<8x512xf32, #tpu.memory_space<vmem>>, %arg2: memref<2x512xf32, #tpu.memory_space<vmem>>, %arg3: memref<8x1xi32, #tpu.memory_space<vmem>>, %arg4: memref<1x1x1xf32, #tpu.memory_space<vmem>>) attributes {dimension_semantics = [#tpu.dimension_semantics<parallel>], iteration_bounds = array<i64: 1>, scalar_prefetch = 0 : i64, scratch_operands = 0 : i64, tpu.core_type = #tpu.core_type<tc>, window_params = [{transform_indices = @transform_0, window_bounds = array<i64: 8, 512>}, {pipeline_mode = #tpu.pipeline_mode<synchronous>, transform_indices = @transform_1, window_bounds = array<i64: 2, 512>}, {transform_indices = @transform_2, window_bounds = array<i64: 8, 1>}, {transform_indices = @transform_3, window_bounds = array<i64: 1, 1, 1>}]} {
    %c0 = arith.constant 0 : index
    %c0_0 = arith.constant 0 : index
    %0 = vector.load %arg1[%c0, %c0_0] : memref<8x512xf32, #tpu.memory_space<vmem>>, vector<8x512xf32>
    %c0_1 = arith.constant 0 : index
    %c0_2 = arith.constant 0 : index
    %1 = vector.load %arg3[%c0_1, %c0_2] : memref<8x1xi32, #tpu.memory_space<vmem>>, vector<8x1xi32>
    %cst = arith.constant 0.000000e+00 : f32
    %2 = vector.broadcast %cst : f32 to vector<8x512xf32>
    %c0_i32 = arith.constant 0 : i32
    %3 = vector.broadcast %c0_i32 : i32 to vector<8x1xi32>
    %4 = arith.cmpi eq, %1, %3 : vector<8x1xi32>
    %c0_3 = arith.constant 0 : index
    %c0_4 = arith.constant 0 : index
    %5 = vector.load %arg2[%c0_3, %c0_4] : memref<2x512xf32, #tpu.memory_space<vmem>>, vector<1x512xf32>
    %6 = vector.shape_cast %4 : vector<8x1xi1> to vector<8x1xi1>
    %7 = vector.broadcast %6 : vector<8x1xi1> to vector<8x512xi1>
    %8 = vector.shape_cast %5 : vector<1x512xf32> to vector<1x512xf32>
    %9 = vector.broadcast %8 : vector<1x512xf32> to vector<8x512xf32>
    %10 = arith.select %7, %9, %2 : vector<8x512xi1>, vector<8x512xf32>
    %c1_i32 = arith.constant 1 : i32
    %11 = vector.broadcast %c1_i32 : i32 to vector<8x1xi32>
    %12 = arith.cmpi eq, %1, %11 : vector<8x1xi32>
    %c1 = arith.constant 1 : index
    %c0_5 = arith.constant 0 : index
    %13 = vector.load %arg2[%c1, %c0_5] : memref<2x512xf32, #tpu.memory_space<vmem>>, vector<1x512xf32>
    %14 = vector.shape_cast %12 : vector<8x1xi1> to vector<8x1xi1>
    %15 = vector.broadcast %14 : vector<8x1xi1> to vector<8x512xi1>
    %16 = vector.shape_cast %13 : vector<1x512xf32> to vector<1x512xf32>
    %17 = vector.broadcast %16 : vector<1x512xf32> to vector<8x512xf32>
    %18 = arith.select %15, %17, %10 : vector<8x512xi1>, vector<8x512xf32>
    %19 = arith.subf %0, %18 : vector<8x512xf32>
    %20 = arith.mulf %19, %19 : vector<8x512xf32>
    %cst_6 = arith.constant dense<0.000000e+00> : vector<8xf32>
    %21 = vector.multi_reduction <add>, %20, %cst_6 [1] : vector<8x512xf32> to vector<8xf32>
    %22 = vector.shape_cast %21 : vector<8xf32> to vector<8x1xf32>
    %cst_7 = arith.constant 9.99999996E-13 : f32
    %cst_8 = arith.constant 9.99999995E+11 : f32
    %23 = vector.broadcast %cst_7 : f32 to vector<8x1xf32>
    %24 = arith.maximumf %23, %22 : vector<8x1xf32>
    %25 = vector.broadcast %cst_8 : f32 to vector<8x1xf32>
    %26 = arith.minimumf %25, %24 : vector<8x1xf32>
    %c0_i32_9 = arith.constant 0 : i32
    %27 = vector.broadcast %c0_i32_9 : i32 to vector<8x1xi32>
    %28 = arith.cmpi sge, %1, %27 : vector<8x1xi32>
    %cst_10 = arith.constant 0.000000e+00 : f32
    %29 = vector.broadcast %cst_10 : f32 to vector<8x1xf32>
    %30 = arith.select %28, %26, %29 : vector<8x1xi1>, vector<8x1xf32>
    %cst_11 = arith.constant dense<0.000000e+00> : vector<1xf32>
    %31 = vector.multi_reduction <add>, %30, %cst_11 [0] : vector<8x1xf32> to vector<1xf32>
    %32 = vector.shape_cast %31 : vector<1xf32> to vector<1x1xf32>
    %33 = vector.shape_cast %32 : vector<1x1xf32> to vector<1x1x1xf32>
    %c0_12 = arith.constant 0 : index
    %c0_13 = arith.constant 0 : index
    %c0_14 = arith.constant 0 : index
    %34 = vector.load %arg4[%c0_12, %c0_13, %c0_14] : memref<1x1x1xf32, #tpu.memory_space<vmem>>, vector<1x1x1xf32>
    tpu.vector_store %arg4[%c0_12, %c0_13, %c0_14], %33 {strides = array<i32>} : memref<1x1x1xf32, #tpu.memory_space<vmem>>, vector<1x1x1xf32>,
    return
  }
  func.func @transform_0(%arg0: i32) -> (i32, i32) {
    %c0_i32 = arith.constant 0 : i32
    %c0_i32_0 = arith.constant 0 : i32
    return %arg0, %c0_i32 : i32, i32
  }
  func.func @transform_1(%arg0: i32) -> (i32, i32) {
    %c0_i32 = arith.constant 0 : i32
    %c0_i32_0 = arith.constant 0 : i32
    %c0_i32_1 = arith.constant 0 : i32
    return %c0_i32, %c0_i32_0 : i32, i32
  }
  func.func @transform_2(%arg0: i32) -> (i32, i32) {
    %c0_i32 = arith.constant 0 : i32
    %c0_i32_0 = arith.constant 0 : i32
    return %arg0, %c0_i32 : i32, i32
  }
  func.func @transform_3(%arg0: i32) -> (i32, i32, i32) {
    %c0_i32 = arith.constant 0 : i32
    %c0_i32_0 = arith.constant 0 : i32
    %c0_i32_1 = arith.constant 0 : i32
    return %arg0, %c0_i32, %c0_i32_0 : i32, i32, i32
  }
}

</mosaic_0001>

<llo_original>
// kernel: tpu_custom_call.1
$region0: #{tpu_custom_call.1}
  #allocation0 [shape = 'u32[]', space=smem, size = 0x4, offset = 0x4, fixed_abs, tag = 'smem constant byte address 0x4 - core index']
  #allocation1 [shape = 'u32[144,128]{1,0:T(1,128)}', space=vmem, size = 0x12000, scoped, tag = 'internal scratch']
  %s0 = inlined_call_operand.hbm [shape: f32[8,512], index: 0, kind: input, shape index: {}]
  %s1 = inlined_call_operand.vmem [shape: f32[2,512], index: 1, kind: input, shape index: {}]
  %s2 = inlined_call_operand.vmem [shape: s32[8,1], index: 2, kind: input, shape index: {}]
  %s3 = inlined_call_operand.hbm [shape: f32[1,1,1], index: 3, kind: output, shape index: {}]
  %s4 = sld [smem:[#allocation0]]
  $region26: #{tpu_custom_call.1} parent=0
    _
  %s6 = ssub.s32 1, %s4
  %s7 = scalar_select 0, %s6, %s4
  $region1: #{tpu_custom_call.1} parent=0
    #allocation2 [shape = 'u8[16384]{0}', space=vmem, size = 0x4000, scoped, tag = 'input window, operand 0, single buffered']
    #allocation3 [shape = 's32[1]{0}', space=sflag, size = 0x4, scoped, tag = 'scoped memory for tpu_custom_call.1']
    #allocation4 [shape = 's32[1]{0}', space=sflag, size = 0x4, scoped, tag = 'scoped memory for tpu_custom_call.1']
    #allocation5 [shape = 'u8[512]{0}', space=vmem, size = 0x400, scoped, tag = 'output window, operand 0, single buffered']
    %8 = vsyncpa [#allocation3], 0
    %9 = vsyncpa [#allocation4], 0
    // Predicated region
    $region2: #{tpu_custom_call.1} parent=1 // pred_check
      _
    $region3: #{tpu_custom_call.1} parent=1 // pred_check_branch
      %11 = sbr.rel (0) target = $region5
    $region4: #{tpu_custom_call.1} parent=1 // pred_region
      %s13 = ssub.s32 512, 512
      %14 = vsyncadd [#allocation3], %s13
      %s16 = sshll.u32 [#allocation2], 4
      %s17 = int_to_ptr.vmem [resolvable:$true] %s16
      %19 = dma.hbm_to_vmem [thread:$0]  %s0, 512, %s17, [#allocation3]
    $region5: #{tpu_custom_call.1} parent=1 // pred_fallthru
      _
    // Predicated region
    $region6: #{tpu_custom_call.1} parent=1 // pred_check
      _
    $region7: #{tpu_custom_call.1} parent=1 // pred_check_branch
      %21 = sbr.rel (0) target = $region9
    $region8: #{tpu_custom_call.1} parent=1 // pred_region
      _
    $region9: #{tpu_custom_call.1} parent=1 // pred_fallthru
      _
    // Predicated region
    $region10: #{tpu_custom_call.1} parent=1 // pred_check
      _
    $region11: #{tpu_custom_call.1} parent=1 // pred_check_branch
      %23 = sbr.rel (0) target = $region13
    $region12: #{tpu_custom_call.1} parent=1 // pred_region
      _
    $region13: #{tpu_custom_call.1} parent=1 // pred_fallthru
      _
    // Predicated region
    $region14: #{tpu_custom_call.1} parent=1 // pred_check
      _
    $region15: #{tpu_custom_call.1} parent=1 // pred_check_branch
      %25 = sbr.rel (0) target = $region17
    $region16: #{tpu_custom_call.1} parent=1 // pred_region
      %26 = dma.done [#allocation3], 512
    $region17: #{tpu_custom_call.1} parent=1 // pred_fallthru
      _
    %v27 = vld [vmem:[#allocation2] sm:$0xff]
    %v28 = vld [vmem:[#allocation2 + $0x8] sm:$0xff]
    %v29 = vld [vmem:[#allocation2 + $0x10] sm:$0xff]
    %v30 = vld [vmem:[#allocation2 + $0x18] sm:$0xff]
    %v31 = vld [vmem:[%s2] sm:$0xff]
    %vm32 = vcmp.eq.s32.totalorder %v31, 0
    %v33 = vld [vmem:[%s1] ss:$2 sm:$0xf]
    %v34 = vsel %vm32, 1, 0
    %35 = vset.pattern.permute.xlu0 0
    %36 = vperm.xlu0 %35, %v34
    %v37 = vpop.permute.xlu0 %36
    %vm38 = vcmp.eq.s32.totalorder %v37, 1
    %v40 = vlaneseq
    %v41 = vshrl.u32 %v40, 7
    %v42 = vsub.s32 0, %v41
    %v43 = vrot.slane %v33, %v42
    %v44 = vlaneseq
    %v45 = vshrl.u32 %v44, 7
    %v46 = vsub.s32 1, %v45
    %v47 = vrot.slane %v33, %v46
    %v48 = vlaneseq
    %v49 = vshrl.u32 %v48, 7
    %v50 = vsub.s32 2, %v49
    %v51 = vrot.slane %v33, %v50
    %v52 = vlaneseq
    %v53 = vshrl.u32 %v52, 7
    %v54 = vsub.s32 3, %v53
    %v55 = vrot.slane %v33, %v54
    %v60 = vsel %vm38, %v43, 0.0
    %v61 = vsel %vm38, %v47, 0.0
    %v62 = vsel %vm38, %v51, 0.0
    %v63 = vsel %vm38, %v55, 0.0
    %vm64 = vcmp.eq.s32.totalorder %v31, 1
    %s65 = scalar_lea.vmem %s1, 1
    %v66 = vld [vmem:[%s65] ss:$2 sm:$0xf]
    %v67 = vsel %vm64, 1, 0
    %68 = vset.pattern.permute.xlu0 0
    %69 = vperm.xlu0 %68, %v67
    %v70 = vpop.permute.xlu0 %69
    %vm71 = vcmp.eq.s32.totalorder %v70, 1
    %v73 = vlaneseq
    %v74 = vshrl.u32 %v73, 7
    %v75 = vsub.s32 0, %v74
    %v76 = vrot.slane %v66, %v75
    %v77 = vlaneseq
    %v78 = vshrl.u32 %v77, 7
    %v79 = vsub.s32 1, %v78
    %v80 = vrot.slane %v66, %v79
    %v81 = vlaneseq
    %v82 = vshrl.u32 %v81, 7
    %v83 = vsub.s32 2, %v82
    %v84 = vrot.slane %v66, %v83
    %v85 = vlaneseq
    %v86 = vshrl.u32 %v85, 7
    %v87 = vsub.s32 3, %v86
    %v88 = vrot.slane %v66, %v87
    %v93 = vsel %vm71, %v76, %v60
    %v94 = vsel %vm71, %v80, %v61
    %v95 = vsel %vm71, %v84, %v62
    %v96 = vsel %vm71, %v88, %v63
    %v97 = vsub.f32 %v27, %v93
    %v98 = vsub.f32 %v28, %v94
    %v99 = vsub.f32 %v29, %v95
    %v100 = vsub.f32 %v30, %v96
    %v101 = vmul.f32 %v97, %v97
    %v102 = vmul.f32 %v98, %v98
    %v103 = vmul.f32 %v99, %v99
    %v104 = vmul.f32 %v100, %v100
    %v105 = vadd.f32 %v101, %v102
    %v106 = vadd.f32 %v105, %v103
    %v107 = vadd.f32 %v106, %v104
    %108 = vadd.xlane.f32.xlu0 %v107
    %v109 = vpop.xlane.xlu0 %108
    %v110 = vmax.f32 %v109, 1e-12
    %v111 = vmin.f32 %v110, 1e+12
    %vm112 = vcmp.ge.s32.totalorder %v31, 0
    %v113 = vsel %vm112, %v111, 0.0
    %vm114 = vcmask 7168
    %v115 = vsel %vm114, %v113, 0.0
    %v116 = vrot.slane %v115, 4
    %v117 = vadd.f32 %v115, %v116
    %v118 = vrot.slane %v117, 2
    %v119 = vadd.f32 %v117, %v118
    %v120 = vrot.slane %v119, 1
    %v121 = vadd.f32 %v119, %v120
    %vm122 = vcmask 0
    %123 = vst.msk [vmem:[#allocation5] sm:$0x1] %vm122, %v121
    // Predicated region
    $region18: #{tpu_custom_call.1} parent=1 // pred_check
      _
    $region19: #{tpu_custom_call.1} parent=1 // pred_check_branch
      %125 = sbr.rel (0) target = $region21
    $region20: #{tpu_custom_call.1} parent=1 // pred_region
      %s127 = ssub.s32 16, 16
      %128 = vsyncadd [#allocation4], %s127
      %s130 = sshll.u32 [#allocation5], 4
      %s131 = int_to_ptr.vmem [resolvable:$true] %s130
      %133 = dma.vmem_to_hbm [thread:$0]  %s131, 16, %s3, [#allocation4]
    $region21: #{tpu_custom_call.1} parent=1 // pred_fallthru
      _
    // Predicated region
    $region22: #{tpu_custom_call.1} parent=1 // pred_check
      _
    $region23: #{tpu_custom_call.1} parent=1 // pred_check_branch
      %135 = sbr.rel (0) target = $region25
    $region24: #{tpu_custom_call.1} parent=1 // pred_region
      %136 = dma.done [#allocation4], 16
    $region25: #{tpu_custom_call.1} parent=1 // pred_fallthru
      _
    %137 = vsyncpa [#allocation3], 1
    %138 = vsyncpa [#allocation4], 1

</llo_original>
